<compile_context>
chip_gen: v7x
topology: tpu7x:2x2x1
jax: 0.10.0
libtpu: 0.0.40
codegen_flags: <defaults>
</compile_context>

<pallas_src>
import functools
import math

import jax
import jax.numpy as jnp
from jax import lax
from jax.experimental import pallas as pl
from jax.experimental.pallas import tpu as pltpu


def _soft_hist_kernel(x_ref, out_ref, *,
                      sigma, delta, vmin, mid, gap_half,
                      n_total, chunk, n_chunks, tn, tiles_per_split,
                      bin_blocks, c, one_minus_c, a_max,
                      hi_factor, hi_fused, use_factored, unroll):
    s = pl.program_id(0)   # sample-axis split ("parallel")
    j = pl.program_id(2)   # sample-tile axis  ("arbitrary", last => resident output)

    @pl.when(j == 0)
    def _():
        out_ref[...] = jnp.zeros_like(out_ref)

    bt = x_ref.shape[0]
    # Logical column of the first sample of this tile (for ragged-tail masking).
    base_col = (s * tiles_per_split + j) * tn
    # Lane index within a chunk (hoisted out of the chunk loop).
    col = lax.broadcasted_iota(jnp.int32, (bt, chunk), 1)

    for k0, nb in bin_blocks:
        # Per-bin exponent sC[k] = sigma*(center_k - mid) + gap/2, materialized at full
        # slab shape ONCE per grid step so the hot loop has no minor-dim broadcasts.
        k3 = lax.broadcasted_iota(jnp.int32, (nb, bt, chunk), 0).astype(jnp.float32)
        centers = vmin + delta * (k3 + (k0 + 0.5))
        sC = sigma * (centers - mid) + gap_half
        cfac = jnp.exp(jnp.minimum(sC, hi_factor)) if use_factored else sC

        def body(ci, acc):
            start = pl.multiple_of(ci * chunk, chunk)
            xs = x_ref[:, pl.ds(start, chunk)]                    # (bt, chunk)
            sA = sigma * (mid - xs)                               # per-sample exponent
            valid = col < (n_total - base_col - start)            # ragged-tail mask
            if use_factored:
                A = jnp.exp(jnp.minimum(sA, hi_factor))           # one exp per sample
                A = jnp.where(valid, A, 0.0)
                a = jnp.minimum(A[None, :, :] * cfac, a_max)      # (nb, bt, chunk)
            else:
                sAm = jnp.where(valid, sA, -1e30)
                a = jnp.exp(jnp.minimum(sAm[None, :, :] + cfac, hi_fused))
            # sigmoid(v+gap) - sigmoid(v) == (1-c) * a / ((1+a)(1+a*c)),  a = exp(-v)
            den = (1.0 + a) * (1.0 + a * c)
            r = pl.reciprocal(den, approx=True)
            r = r * (2.0 - den * r)                               # one Newton step
            return acc + a * r

        acc = lax.fori_loop(0, n_chunks, body,
                            jnp.zeros((nb, bt, chunk), jnp.float32),
                            unroll=unroll)
        # Cross-lane reduce and constant (1-c) applied once per grid step.
        contrib = jnp.sum(acc, axis=-1) * one_minus_c             # (nb, bt)
        out_ref[0, 0, k0:k0 + nb, :] = out_ref[0, 0, k0:k0 + nb, :] + contrib


def soft_histogram(x, bins, vmin, vmax, sigma, *, tn=8192):
    """Pallas TPU implementation of SoftHistogram.forward.  x: (B, N) -> (B, bins)."""
    B, N = x.shape
    bins = int(bins)
    x = x.astype(jnp.float32)
    vmin, vmax, sigma = float(vmin), float(vmax), float(sigma)
    delta = (vmax - vmin) / float(bins)
    gap = sigma * delta
    c = math.exp(-gap) if gap < 500.0 else 0.0
    mid = 0.5 * (vmin + vmax)

    # Batch block (sublane rule: multiple of 8, or the full batch).
    bt = 8 if (B >= 16 and B % 8 == 0) else B
    nbb = B // bt

    # Sample chunk (lanes) and per-grid-step tile (multiple of chunk, <= needed).
    chunk = 128 if N >= 128 else N
    needed = pl.cdiv(N, chunk) * chunk
    tn = max(chunk, (int(tn) // chunk) * chunk)
    if needed <= tn:
        tn = needed
    n_chunks = tn // chunk
    t_total = pl.cdiv(N, tn)

    # Sample-axis split so multi-TC chips (v7x) get >=2 parallel blocks even when there
    # is a single batch block; partials are combined in the wrapper.
    n_split = 2 if (nbb < 2 and t_total >= 2) else 1
    tps = pl.cdiv(t_total, n_split)
    t_last = t_total - 1

    # Bin sub-blocks bound the live slab to ~16 vregs (ceil(bt/8) rows * nb * 128 lanes).
    rows = -(-bt // 8)
    max_nb = max(1, 16 // rows)
    if bins <= max_nb:
        nb0 = bins
    elif max_nb >= 8:
        nb0 = (max_nb // 8) * 8
    else:
        nb0 = max_nb
    bin_blocks, k0 = [], 0
    while k0 < bins:
        nb = min(nb0, bins - k0)
        bin_blocks.append((k0, nb))
        k0 += nb

    # Saturation bounds: keep every f32 intermediate finite.  Clamped far-bin leakage
    # is ~(1-c)/(a_max*c) ~ 1e-18 per sample, negligible vs the +1e-6 epsilon.
    hi_fused = min(0.5 * (88.0 + gap) - 2.0, 80.0)
    hi_factor = 80.0
    a_max = math.exp(hi_fused)
    # Factorized path is exact only while in-range samples cannot saturate a factor.
    use_factored = (0.5 * sigma * abs(vmax - vmin) + 0.5 * abs(gap)) < 75.0

    kernel = functools.partial(
        _soft_hist_kernel,
        sigma=sigma, delta=delta, vmin=vmin, mid=mid, gap_half=0.5 * gap,
        n_total=N, chunk=chunk, n_chunks=n_chunks, tn=tn, tiles_per_split=tps,
        bin_blocks=tuple(bin_blocks), c=c, one_minus_c=1.0 - c, a_max=a_max,
        hi_factor=hi_factor, hi_fused=hi_fused, use_factored=use_factored,
        unroll=2 if n_chunks >= 2 else 1)

    partial4 = pl.pallas_call(
        kernel,
        out_shape=jax.ShapeDtypeStruct((n_split, nbb, bins, bt), jnp.float32),
        grid_spec=pltpu.PrefetchScalarGridSpec(
            num_scalar_prefetch=0,
            grid=(n_split, nbb, tps),                       # reduction axis last
            in_specs=[pl.BlockSpec(
                (bt, tn),
                lambda s, i, j: (i, jnp.minimum(s * tps + j, t_last)))],
            out_specs=pl.BlockSpec((1, 1, bins, bt),
                                   lambda s, i, j: (s, i, 0, 0)),
        ),
        compiler_params=pltpu.CompilerParams(
            dimension_semantics=("parallel", "parallel", "arbitrary")),
    )(x)

    # Tiny combine: sum sample splits, restore (B, bins) layout, +1e-6, normalize.
    part = jnp.transpose(jnp.sum(partial4, axis=0), (0, 2, 1)).reshape(B, bins)
    hist = part + 1e-6
    return hist / jnp.sum(hist, axis=-1, keepdims=True)


def soft_histogram_ref(x, bins, vmin, vmax, sigma):
    """Pure-JAX reference mirroring the PyTorch forward exactly."""
    delta = float(vmax - vmin) / float(bins)
    centers = float(vmin) + delta * (jnp.arange(bins, dtype=jnp.float32) + 0.5)
    d = x[:, None, :] - centers[None, :, None]
    y = (jax.nn.sigmoid(sigma * (d + delta / 2))
         - jax.nn.sigmoid(sigma * (d - delta / 2)))
    hist = y.sum(axis=-1) + 1e-6
    return hist / hist.sum(axis=-1, keepdims=True)


if __name__ == "__main__":
    key = jax.random.PRNGKey(0)
    bins, vmin, vmax, sigma = 16, 0.0, 1.0, 50.0

    # 1) Small case (factorized-exp fast path, single tile).
    x1 = jax.random.uniform(key, (2, 256), dtype=jnp.float32, minval=vmin, maxval=vmax)
    out1 = jax.block_until_ready(soft_histogram(x1, bins, vmin, vmax, sigma))
    ref1 = soft_histogram_ref(x1, bins, vmin, vmax, sigma)
    assert out1.shape == (2, bins)
    assert jnp.allclose(out1, ref1, atol=1e-5, rtol=1e-5), "case1 mismatch vs reference"

    # 2) Ragged N + sample-axis split (in-kernel tail masking, no wrapper jnp.pad).
    x2 = jax.random.uniform(jax.random.PRNGKey(1), (3, 9000), dtype=jnp.float32,
                            minval=vmin, maxval=vmax)
    out2 = jax.block_until_ready(soft_histogram(x2, bins, vmin, vmax, sigma))
    ref2 = soft_histogram_ref(x2, bins, vmin, vmax, sigma)
    assert jnp.allclose(out2, ref2, atol=1e-5, rtol=1e-5), "case2 mismatch vs reference"

    # 3) Steep-sigmoid regime -> fused-exp fallback path.
    out3 = jax.block_until_ready(soft_histogram(x1, bins, vmin, vmax, 500.0))
    ref3 = soft_histogram_ref(x1, bins, vmin, vmax, 500.0)
    assert jnp.allclose(out3, ref3, atol=1e-5, rtol=1e-5), "case3 mismatch vs reference"

    print("KERNEL_OK")
</pallas_src>

<mosaic_0001>
module attributes {stable_mosaic.version = 11 : i64} {
  func.func @_soft_hist_kernel(%arg0: i32, %arg1: i32, %arg2: i32, %arg3: memref<2x256xf32, #tpu.memory_space<vmem>>, %arg4: memref<1x1x16x2xf32, #tpu.memory_space<vmem>>) attributes {dimension_semantics = [#tpu.dimension_semantics<parallel>, #tpu.dimension_semantics<parallel>, #tpu.dimension_semantics<arbitrary>], iteration_bounds = array<i64: 1, 1, 1>, scalar_prefetch = 0 : i64, scratch_operands = 0 : i64, tpu.core_type = #tpu.core_type<tc>, window_params = [{transform_indices = @transform_0, window_bounds = array<i64: 2, 256>}, {transform_indices = @transform_1, window_bounds = array<i64: 1, 1, 16, 2>}]} {
    %c0_i32 = arith.constant 0 : i32
    %0 = arith.cmpi eq, %arg2, %c0_i32 : i32
    %1 = arith.extui %0 : i1 to i32
    %c0_i32_0 = arith.constant 0 : i32
    %2 = arith.cmpi ne, %1, %c0_i32_0 : i32
    scf.if %2 {
      %cst_42 = arith.constant 0.000000e+00 : f32
      %106 = vector.broadcast %cst_42 : f32 to vector<1x1x16x2xf32>
      %c0_43 = arith.constant 0 : index
      %c0_44 = arith.constant 0 : index
      %c0_45 = arith.constant 0 : index
      %c0_46 = arith.constant 0 : index
      %107 = vector.load %arg4[%c0_43, %c0_44, %c0_45, %c0_46] : memref<1x1x16x2xf32, #tpu.memory_space<vmem>>, vector<1x1x16x2xf32>
      tpu.vector_store %arg4[%c0_43, %c0_44, %c0_45, %c0_46], %106 {strides = array<i32>} : memref<1x1x16x2xf32, #tpu.memory_space<vmem>>, vector<1x1x16x2xf32>,
    } else {
    }
    %c1_i32 = arith.constant 1 : i32
    %3 = arith.muli %arg0, %c1_i32 : i32
    %4 = arith.addi %3, %arg2 : i32
    %c256_i32 = arith.constant 256 : i32
    %5 = arith.muli %4, %c256_i32 : i32
    %6 = tpu.iota {dimensions = array<i32: 1>} : vector<2x128xi32>
    %7 = tpu.iota {dimensions = array<i32: 0>} : vector<16x2x128xi32>
    %8 = arith.sitofp %7 : vector<16x2x128xi32> to vector<16x2x128xf32>
    %cst = arith.constant 5.000000e-01 : f32
    %9 = vector.broadcast %cst : f32 to vector<16x2x128xf32>
    %10 = arith.addf %8, %9 : vector<16x2x128xf32>
    %cst_1 = arith.constant 6.250000e-02 : f32
    %11 = vector.broadcast %cst_1 : f32 to vector<16x2x128xf32>
    %12 = arith.mulf %11, %10 : vector<16x2x128xf32>
    %cst_2 = arith.constant 0.000000e+00 : f32
    %13 = vector.broadcast %cst_2 : f32 to vector<16x2x128xf32>
    %14 = arith.addf %13, %12 : vector<16x2x128xf32>
    %cst_3 = arith.constant 5.000000e-01 : f32
    %15 = vector.broadcast %cst_3 : f32 to vector<16x2x128xf32>
    %16 = arith.subf %14, %15 : vector<16x2x128xf32>
    %cst_4 = arith.constant 5.000000e+01 : f32
    %17 = vector.broadcast %cst_4 : f32 to vector<16x2x128xf32>
    %18 = arith.mulf %17, %16 : vector<16x2x128xf32>
    %cst_5 = arith.constant 1.562500e+00 : f32
    %19 = vector.broadcast %cst_5 : f32 to vector<16x2x128xf32>
    %20 = arith.addf %18, %19 : vector<16x2x128xf32>
    %cst_6 = arith.constant 8.000000e+01 : f32
    %21 = vector.broadcast %cst_6 : f32 to vector<16x2x128xf32>
    %22 = arith.minimumf %20, %21 : vector<16x2x128xf32>
    %23 = math.exp %22 : vector<16x2x128xf32>
    %cst_7 = arith.constant 0.000000e+00 : f32
    %24 = vector.broadcast %cst_7 : f32 to vector<16x2x128xf32>
    %c0_i32_8 = arith.constant 0 : i32
    %c128_i32 = arith.constant 128 : i32
    %25 = arith.muli %c0_i32_8, %c128_i32 : i32
    %26 = tpu.assume_multiple %25, 128 : i32
    %c0 = arith.constant 0 : index
    %27 = arith.index_cast %26 : i32 to index
    %28 = vector.load %arg3[%c0, %27] : memref<2x256xf32, #tpu.memory_space<vmem>>, vector<2x128xf32>
    %cst_9 = arith.constant 5.000000e-01 : f32
    %29 = vector.broadcast %cst_9 : f32 to vector<2x128xf32>
    %30 = arith.subf %29, %28 : vector<2x128xf32>
    %cst_10 = arith.constant 5.000000e+01 : f32
    %31 = vector.broadcast %cst_10 : f32 to vector<2x128xf32>
    %32 = arith.mulf %31, %30 : vector<2x128xf32>
    %c256_i32_11 = arith.constant 256 : i32
    %33 = arith.subi %c256_i32_11, %5 : i32
    %34 = arith.subi %33, %26 : i32
    %35 = vector.broadcast %34 : i32 to vector<2x128xi32>
    %36 = arith.cmpi slt, %6, %35 : vector<2x128xi32>
    %cst_12 = arith.constant 8.000000e+01 : f32
    %37 = vector.broadcast %cst_12 : f32 to vector<2x128xf32>
    %38 = arith.minimumf %32, %37 : vector<2x128xf32>
    %39 = math.exp %38 : vector<2x128xf32>
    %cst_13 = arith.constant 0.000000e+00 : f32
    %40 = vector.broadcast %cst_13 : f32 to vector<2x128xf32>
    %41 = arith.select %36, %39, %40 : vector<2x128xi1>, vector<2x128xf32>
    %42 = vector.shape_cast %41 : vector<2x128xf32> to vector<1x2x128xf32>
    %43 = vector.broadcast %42 : vector<1x2x128xf32> to vector<16x2x128xf32>
    %44 = arith.mulf %43, %23 : vector<16x2x128xf32>
    %cst_14 = arith.constant 8.29761678E+18 : f32
    %45 = vector.broadcast %cst_14 : f32 to vector<16x2x128xf32>
    %46 = arith.minimumf %44, %45 : vector<16x2x128xf32>
    %cst_15 = arith.constant 1.000000e+00 : f32
    %47 = vector.broadcast %cst_15 : f32 to vector<16x2x128xf32>
    %48 = arith.addf %47, %46 : vector<16x2x128xf32>
    %cst_16 = arith.constant 0.0439369343 : f32
    %49 = vector.broadcast %cst_16 : f32 to vector<16x2x128xf32>
    %50 = arith.mulf %46, %49 : vector<16x2x128xf32>
    %cst_17 = arith.constant 1.000000e+00 : f32
    %51 = vector.broadcast %cst_17 : f32 to vector<16x2x128xf32>
    %52 = arith.addf %51, %50 : vector<16x2x128xf32>
    %53 = arith.mulf %48, %52 : vector<16x2x128xf32>
    %54 = tpu.reciprocal %53 {approx = true} : vector<16x2x128xf32> -> vector<16x2x128xf32>
    %55 = arith.mulf %53, %54 : vector<16x2x128xf32>
    %cst_18 = arith.constant 2.000000e+00 : f32
    %56 = vector.broadcast %cst_18 : f32 to vector<16x2x128xf32>
    %57 = arith.subf %56, %55 : vector<16x2x128xf32>
    %58 = arith.mulf %54, %57 : vector<16x2x128xf32>
    %59 = arith.mulf %46, %58 : vector<16x2x128xf32>
    %60 = arith.addf %24, %59 : vector<16x2x128xf32>
    %c1_i32_19 = arith.constant 1 : i32
    %c128_i32_20 = arith.constant 128 : i32
    %61 = arith.muli %c1_i32_19, %c128_i32_20 : i32
    %62 = tpu.assume_multiple %61, 128 : i32
    %c0_21 = arith.constant 0 : index
    %63 = arith.index_cast %62 : i32 to index
    %64 = vector.load %arg3[%c0_21, %63] : memref<2x256xf32, #tpu.memory_space<vmem>>, vector<2x128xf32>
    %cst_22 = arith.constant 5.000000e-01 : f32
    %65 = vector.broadcast %cst_22 : f32 to vector<2x128xf32>
    %66 = arith.subf %65, %64 : vector<2x128xf32>
    %cst_23 = arith.constant 5.000000e+01 : f32
    %67 = vector.broadcast %cst_23 : f32 to vector<2x128xf32>
    %68 = arith.mulf %67, %66 : vector<2x128xf32>
    %c256_i32_24 = arith.constant 256 : i32
    %69 = arith.subi %c256_i32_24, %5 : i32
    %70 = arith.subi %69, %62 : i32
    %71 = vector.broadcast %70 : i32 to vector<2x128xi32>
    %72 = arith.cmpi slt, %6, %71 : vector<2x128xi32>
    %cst_25 = arith.constant 8.000000e+01 : f32
    %73 = vector.broadcast %cst_25 : f32 to vector<2x128xf32>
    %74 = arith.minimumf %68, %73 : vector<2x128xf32>
    %75 = math.exp %74 : vector<2x128xf32>
    %cst_26 = arith.constant 0.000000e+00 : f32
    %76 = vector.broadcast %cst_26 : f32 to vector<2x128xf32>
    %77 = arith.select %72, %75, %76 : vector<2x128xi1>, vector<2x128xf32>
    %78 = vector.shape_cast %77 : vector<2x128xf32> to vector<1x2x128xf32>
    %79 = vector.broadcast %78 : vector<1x2x128xf32> to vector<16x2x128xf32>
    %80 = arith.mulf %79, %23 : vector<16x2x128xf32>
    %cst_27 = arith.constant 8.29761678E+18 : f32
    %81 = vector.broadcast %cst_27 : f32 to vector<16x2x128xf32>
    %82 = arith.minimumf %80, %81 : vector<16x2x128xf32>
    %cst_28 = arith.constant 1.000000e+00 : f32
    %83 = vector.broadcast %cst_28 : f32 to vector<16x2x128xf32>
    %84 = arith.addf %83, %82 : vector<16x2x128xf32>
    %cst_29 = arith.constant 0.0439369343 : f32
    %85 = vector.broadcast %cst_29 : f32 to vector<16x2x128xf32>
    %86 = arith.mulf %82, %85 : vector<16x2x128xf32>
    %cst_30 = arith.constant 1.000000e+00 : f32
    %87 = vector.broadcast %cst_30 : f32 to vector<16x2x128xf32>
    %88 = arith.addf %87, %86 : vector<16x2x128xf32>
    %89 = arith.mulf %84, %88 : vector<16x2x128xf32>
    %90 = tpu.reciprocal %89 {approx = true} : vector<16x2x128xf32> -> vector<16x2x128xf32>
    %91 = arith.mulf %89, %90 : vector<16x2x128xf32>
    %cst_31 = arith.constant 2.000000e+00 : f32
    %92 = vector.broadcast %cst_31 : f32 to vector<16x2x128xf32>
    %93 = arith.subf %92, %91 : vector<16x2x128xf32>
    %94 = arith.mulf %90, %93 : vector<16x2x128xf32>
    %95 = arith.mulf %82, %94 : vector<16x2x128xf32>
    %96 = arith.addf %60, %95 : vector<16x2x128xf32>
    %c2_i32 = arith.constant 2 : i32
    %cst_32 = arith.constant dense<0.000000e+00> : vector<16x2xf32>
    %97 = vector.multi_reduction <add>, %96, %cst_32 [2] : vector<16x2x128xf32> to vector<16x2xf32>
    %cst_33 = arith.constant 0.956063091 : f32
    %98 = vector.broadcast %cst_33 : f32 to vector<16x2xf32>
    %99 = arith.mulf %97, %98 : vector<16x2xf32>
    %c0_34 = arith.constant 0 : index
    %c0_35 = arith.constant 0 : index
    %c0_36 = arith.constant 0 : index
    %c0_37 = arith.constant 0 : index
    %100 = vector.load %arg4[%c0_34, %c0_35, %c0_36, %c0_37] : memref<1x1x16x2xf32, #tpu.memory_space<vmem>>, vector<1x1x16x2xf32>
    %101 = vector.shape_cast %100 : vector<1x1x16x2xf32> to vector<16x2xf32>
    %102 = arith.addf %101, %99 : vector<16x2xf32>
    %c0_38 = arith.constant 0 : index
    %c0_39 = arith.constant 0 : index
    %c0_40 = arith.constant 0 : index
    %c0_41 = arith.constant 0 : index
    %103 = vector.load %arg4[%c0_38, %c0_39, %c0_40, %c0_41] : memref<1x1x16x2xf32, #tpu.memory_space<vmem>>, vector<1x1x16x2xf32>
    %104 = vector.shape_cast %103 : vector<1x1x16x2xf32> to vector<16x2xf32>
    %105 = vector.shape_cast %102 : vector<16x2xf32> to vector<1x1x16x2xf32>
    tpu.vector_store %arg4[%c0_38, %c0_39, %c0_40, %c0_41], %105 {strides = array<i32>} : memref<1x1x16x2xf32, #tpu.memory_space<vmem>>, vector<1x1x16x2xf32>,
    return
  }
  func.func @transform_0(%arg0: i32, %arg1: i32, %arg2: i32) -> (i32, i32) {
    %c1_i32 = arith.constant 1 : i32
    %0 = arith.muli %arg0, %c1_i32 : i32
    %1 = arith.addi %0, %arg2 : i32
    %c0_i32 = arith.constant 0 : i32
    %2 = arith.minsi %1, %c0_i32 : i32
    %c0_i32_0 = arith.constant 0 : i32
    return %arg1, %2 : i32, i32
  }
  func.func @transform_1(%arg0: i32, %arg1: i32, %arg2: i32) -> (i32, i32, i32, i32) {
    %c0_i32 = arith.constant 0 : i32
    %c0_i32_0 = arith.constant 0 : i32
    %c0_i32_1 = arith.constant 0 : i32
    return %arg0, %arg1, %c0_i32, %c0_i32_0 : i32, i32, i32, i32
  }
}

</mosaic_0001>

<llo_original>
// kernel: tpu_custom_call.1
$region0: #{tpu_custom_call.1}
  #allocation0 [shape = 'u32[]', space=smem, size = 0x4, offset = 0x4, fixed_abs, tag = 'smem constant byte address 0x4 - core index']
  #allocation1 [shape = 'u32[144,128]{1,0:T(1,128)}', space=vmem, size = 0x12000, scoped, tag = 'internal scratch']
  %s0 = inlined_call_operand.hbm [shape: f32[2,256], index: 0, kind: input, shape index: {}]
  %s1 = inlined_call_operand.vmem [shape: f32[1,1,16,2], index: 1, kind: output, shape index: {}]
  %s2 = sld [smem:[#allocation0]]
  $region22: #{tpu_custom_call.1} parent=0
    _
  %s4 = ssub.s32 1, %s2
  %s5 = scalar_select 0, %s4, %s2
  $region1: #{tpu_custom_call.1} parent=0
    #allocation2 [shape = 'u8[2048]{0}', space=vmem, size = 0x800, scoped, tag = 'input window, operand 0, single buffered']
    #allocation3 [shape = 's32[1]{0}', space=sflag, size = 0x4, scoped, tag = 'scoped memory for tpu_custom_call.1']
    %6 = vsyncpa [#allocation3], 0
    // Predicated region
    $region2: #{tpu_custom_call.1} parent=1 // pred_check
      _
    $region3: #{tpu_custom_call.1} parent=1 // pred_check_branch
      %8 = sbr.rel (0) target = $region5
    $region4: #{tpu_custom_call.1} parent=1 // pred_region
      %s9 = sadd.s32 0, 0
      %p10 = scmp.lt.s32.totalorder %s9, 0
      %s11 = scalar_select %p10, %s9, 0
      %s12 = smul.u32 2, %s11
      %s14 = ssub.s32 64, 64
      %15 = vsyncadd [#allocation3], %s14
      %s16 = smul.addr %s12, 32
      %s17 = scalar_lea.hbm %s0, %s16
      %s19 = sshll.u32 [#allocation2], 4
      %s20 = int_to_ptr.vmem [resolvable:$true] %s19
      %22 = dma.hbm_to_vmem [thread:$0]  %s17, 64, %s20, [#allocation3]
    $region5: #{tpu_custom_call.1} parent=1 // pred_fallthru
      _
    // Predicated region
    $region6: #{tpu_custom_call.1} parent=1 // pred_check
      _
    $region7: #{tpu_custom_call.1} parent=1 // pred_check_branch
      %24 = sbr.rel (0) target = $region9
    $region8: #{tpu_custom_call.1} parent=1 // pred_region
      %25 = dma.done [#allocation3], 64
    $region9: #{tpu_custom_call.1} parent=1 // pred_fallthru
      _
    %s26 = sadd.s32 0, 0
    %p27 = scmp.lt.s32.totalorder %s26, 0
    %s28 = scalar_select %p27, %s26, 0
    %s29 = smul.u32 2, %s28
    %p30 = scmp.eq.s32.totalorder 0, 0
    // Predicated region
    $region10: #{tpu_custom_call.1} parent=1 // pred_check
      %p31 = pneg %p30
    $region11: #{tpu_custom_call.1} parent=1 // pred_check_branch
      %33 = sbr.rel (%p31) target = $region13
    $region12: #{tpu_custom_call.1} parent=1 // pred_region
      %vm34 = vcmask 15360
      %35 = vst.msk [vmem:[%s1] sm:$0xff] %vm34, 0.0
      %36 = vst.msk [vmem:[%s1 + $0x8] sm:$0xff] %vm34, 0.0
    $region13: #{tpu_custom_call.1} parent=1 // pred_fallthru
      _
    %s37 = sadd.s32 0, 0
    %s38 = smul.u32 %s37, 256
    %v39 = vlaneseq
    %v40 = vand.u32 %v39, 127
    %v41 = vcvt.s32.f32 0
    %v42 = vcvt.s32.f32 1
    %v43 = vcvt.s32.f32 2
    %v44 = vcvt.s32.f32 3
    %v45 = vcvt.s32.f32 4
    %v46 = vcvt.s32.f32 5
    %v47 = vcvt.s32.f32 6
    %v48 = vcvt.s32.f32 7
    %v49 = vcvt.s32.f32 8
    %v50 = vcvt.s32.f32 9
    %v51 = vcvt.s32.f32 10
    %v52 = vcvt.s32.f32 11
    %v53 = vcvt.s32.f32 12
    %v54 = vcvt.s32.f32 13
    %v55 = vcvt.s32.f32 14
    %v56 = vcvt.s32.f32 15
    %v57 = vadd.f32 %v41, 0.5
    %v58 = vadd.f32 %v42, 0.5
    %v59 = vadd.f32 %v43, 0.5
    %v60 = vadd.f32 %v44, 0.5
    %v61 = vadd.f32 %v45, 0.5
    %v62 = vadd.f32 %v46, 0.5
    %v63 = vadd.f32 %v47, 0.5
    %v64 = vadd.f32 %v48, 0.5
    %v65 = vadd.f32 %v49, 0.5
    %v66 = vadd.f32 %v50, 0.5
    %v67 = vadd.f32 %v51, 0.5
    %v68 = vadd.f32 %v52, 0.5
    %v69 = vadd.f32 %v53, 0.5
    %v70 = vadd.f32 %v54, 0.5
    %v71 = vadd.f32 %v55, 0.5
    %v72 = vadd.f32 %v56, 0.5
    %v73 = vmul.f32 %v57, 0.0625
    %v74 = vmul.f32 %v58, 0.0625
    %v75 = vmul.f32 %v59, 0.0625
    %v76 = vmul.f32 %v60, 0.0625
    %v77 = vmul.f32 %v61, 0.0625
    %v78 = vmul.f32 %v62, 0.0625
    %v79 = vmul.f32 %v63, 0.0625
    %v80 = vmul.f32 %v64, 0.0625
    %v81 = vmul.f32 %v65, 0.0625
    %v82 = vmul.f32 %v66, 0.0625
    %v83 = vmul.f32 %v67, 0.0625
    %v84 = vmul.f32 %v68, 0.0625
    %v85 = vmul.f32 %v69, 0.0625
    %v86 = vmul.f32 %v70, 0.0625
    %v87 = vmul.f32 %v71, 0.0625
    %v88 = vmul.f32 %v72, 0.0625
    %v89 = vadd.f32 %v73, 0.0
    %v90 = vadd.f32 %v74, 0.0
    %v91 = vadd.f32 %v75, 0.0
    %v92 = vadd.f32 %v76, 0.0
    %v93 = vadd.f32 %v77, 0.0
    %v94 = vadd.f32 %v78, 0.0
    %v95 = vadd.f32 %v79, 0.0
    %v96 = vadd.f32 %v80, 0.0
    %v97 = vadd.f32 %v81, 0.0
    %v98 = vadd.f32 %v82, 0.0
    %v99 = vadd.f32 %v83, 0.0
    %v100 = vadd.f32 %v84, 0.0
    %v101 = vadd.f32 %v85, 0.0
    %v102 = vadd.f32 %v86, 0.0
    %v103 = vadd.f32 %v87, 0.0
    %v104 = vadd.f32 %v88, 0.0
    %v105 = vsub.f32 %v89, 0.5
    %v106 = vsub.f32 %v90, 0.5
    %v107 = vsub.f32 %v91, 0.5
    %v108 = vsub.f32 %v92, 0.5
    %v109 = vsub.f32 %v93, 0.5
    %v110 = vsub.f32 %v94, 0.5
    %v111 = vsub.f32 %v95, 0.5
    %v112 = vsub.f32 %v96, 0.5
    %v113 = vsub.f32 %v97, 0.5
    %v114 = vsub.f32 %v98, 0.5
    %v115 = vsub.f32 %v99, 0.5
    %v116 = vsub.f32 %v100, 0.5
    %v117 = vsub.f32 %v101, 0.5
    %v118 = vsub.f32 %v102, 0.5
    %v119 = vsub.f32 %v103, 0.5
    %v120 = vsub.f32 %v104, 0.5
    %v121 = vmul.f32 %v105, 50.0
    %v122 = vmul.f32 %v106, 50.0
    %v123 = vmul.f32 %v107, 50.0
    %v124 = vmul.f32 %v108, 50.0
    %v125 = vmul.f32 %v109, 50.0
    %v126 = vmul.f32 %v110, 50.0
    %v127 = vmul.f32 %v111, 50.0
    %v128 = vmul.f32 %v112, 50.0
    %v129 = vmul.f32 %v113, 50.0
    %v130 = vmul.f32 %v114, 50.0
    %v131 = vmul.f32 %v115, 50.0
    %v132 = vmul.f32 %v116, 50.0
    %v133 = vmul.f32 %v117, 50.0
    %v134 = vmul.f32 %v118, 50.0
    %v135 = vmul.f32 %v119, 50.0
    %v136 = vmul.f32 %v120, 50.0
    %v137 = vadd.f32 %v121, 1.5625
    %v138 = vadd.f32 %v122, 1.5625
    %v139 = vadd.f32 %v123, 1.5625
    %v140 = vadd.f32 %v124, 1.5625
    %v141 = vadd.f32 %v125, 1.5625
    %v142 = vadd.f32 %v126, 1.5625
    %v143 = vadd.f32 %v127, 1.5625
    %v144 = vadd.f32 %v128, 1.5625
    %v145 = vadd.f32 %v129, 1.5625
    %v146 = vadd.f32 %v130, 1.5625
    %v147 = vadd.f32 %v131, 1.5625
    %v148 = vadd.f32 %v132, 1.5625
    %v149 = vadd.f32 %v133, 1.5625
    %v150 = vadd.f32 %v134, 1.5625
    %v151 = vadd.f32 %v135, 1.5625
    %v152 = vadd.f32 %v136, 1.5625
    %v153 = vmin.f32 %v137, 80.0
    %v154 = vmin.f32 %v138, 80.0
    %v155 = vmin.f32 %v139, 80.0
    %v156 = vmin.f32 %v140, 80.0
    %v157 = vmin.f32 %v141, 80.0
    %v158 = vmin.f32 %v142, 80.0
    %v159 = vmin.f32 %v143, 80.0
    %v160 = vmin.f32 %v144, 80.0
    %v161 = vmin.f32 %v145, 80.0
    %v162 = vmin.f32 %v146, 80.0
    %v163 = vmin.f32 %v147, 80.0
    %v164 = vmin.f32 %v148, 80.0
    %v165 = vmin.f32 %v149, 80.0
    %v166 = vmin.f32 %v150, 80.0
    %v167 = vmin.f32 %v151, 80.0
    %v168 = vmin.f32 %v152, 80.0
    %v169 = vmul.f32 %v153, 1.442695
    %v170 = vpow.pop %v169
    %v171 = vmul.f32 %v154, 1.442695
    %v172 = vpow.pop %v171
    %v173 = vmul.f32 %v155, 1.442695
    %v174 = vpow.pop %v173
    %v175 = vmul.f32 %v156, 1.442695
    %v176 = vpow.pop %v175
    %v177 = vmul.f32 %v157, 1.442695
    %v178 = vpow.pop %v177
    %v179 = vmul.f32 %v158, 1.442695
    %v180 = vpow.pop %v179
    %v181 = vmul.f32 %v159, 1.442695
    %v182 = vpow.pop %v181
    %v183 = vmul.f32 %v160, 1.442695
    %v184 = vpow.pop %v183
    %v185 = vmul.f32 %v161, 1.442695
    %v186 = vpow.pop %v185
    %v187 = vmul.f32 %v162, 1.442695
    %v188 = vpow.pop %v187
    %v189 = vmul.f32 %v163, 1.442695
    %v190 = vpow.pop %v189
    %v191 = vmul.f32 %v164, 1.442695
    %v192 = vpow.pop %v191
    %v193 = vmul.f32 %v165, 1.442695
    %v194 = vpow.pop %v193
    %v195 = vmul.f32 %v166, 1.442695
    %v196 = vpow.pop %v195
    %v197 = vmul.f32 %v167, 1.442695
    %v198 = vpow.pop %v197
    %v199 = vmul.f32 %v168, 1.442695
    %v200 = vpow.pop %v199
    %v201 = vld [vmem:[#allocation2] sm:$0x3]
    %v202 = vsub.f32 0.5, %v201
    %v203 = vmul.f32 %v202, 50.0
    %s204 = ssub.s32 256, %s38
    %s205 = ssub.s32 %s204, 0
    %v206 = vstv %s205
    %vm207 = vcmp.lt.s32.totalorder %v40, %v206
    %v208 = vmin.f32 %v203, 80.0
    %v209 = vmul.f32 %v208, 1.442695
    %v210 = vpow.pop %v209
    %v211 = vsel %vm207, %v210, 0.0
    %v212 = vmul.f32 %v211, %v170
    %v213 = vmul.f32 %v211, %v172
    %v214 = vmul.f32 %v211, %v174
    %v215 = vmul.f32 %v211, %v176
    %v216 = vmul.f32 %v211, %v178
    %v217 = vmul.f32 %v211, %v180
    %v218 = vmul.f32 %v211, %v182
    %v219 = vmul.f32 %v211, %v184
    %v220 = vmul.f32 %v211, %v186
    %v221 = vmul.f32 %v211, %v188
    %v222 = vmul.f32 %v211, %v190
    %v223 = vmul.f32 %v211, %v192
    %v224 = vmul.f32 %v211, %v194
    %v225 = vmul.f32 %v211, %v196
    %v226 = vmul.f32 %v211, %v198
    %v227 = vmul.f32 %v211, %v200
    %v228 = vmin.f32 %v212, 8.297617e+18
    %v229 = vmin.f32 %v213, 8.297617e+18
    %v230 = vmin.f32 %v214, 8.297617e+18
    %v231 = vmin.f32 %v215, 8.297617e+18
    %v232 = vmin.f32 %v216, 8.297617e+18
    %v233 = vmin.f32 %v217, 8.297617e+18
    %v234 = vmin.f32 %v218, 8.297617e+18
    %v235 = vmin.f32 %v219, 8.297617e+18
    %v236 = vmin.f32 %v220, 8.297617e+18
    %v237 = vmin.f32 %v221, 8.297617e+18
    %v238 = vmin.f32 %v222, 8.297617e+18
    %v239 = vmin.f32 %v223, 8.297617e+18
    %v240 = vmin.f32 %v224, 8.297617e+18
    %v241 = vmin.f32 %v225, 8.297617e+18
    %v242 = vmin.f32 %v226, 8.297617e+18
    %v243 = vmin.f32 %v227, 8.297617e+18
    %v244 = vadd.f32 %v228, 1.0
    %v245 = vadd.f32 %v229, 1.0
    %v246 = vadd.f32 %v230, 1.0
    %v247 = vadd.f32 %v231, 1.0
    %v248 = vadd.f32 %v232, 1.0
    %v249 = vadd.f32 %v233, 1.0
    %v250 = vadd.f32 %v234, 1.0
    %v251 = vadd.f32 %v235, 1.0
    %v252 = vadd.f32 %v236, 1.0
    %v253 = vadd.f32 %v237, 1.0
    %v254 = vadd.f32 %v238, 1.0
    %v255 = vadd.f32 %v239, 1.0
    %v256 = vadd.f32 %v240, 1.0
    %v257 = vadd.f32 %v241, 1.0
    %v258 = vadd.f32 %v242, 1.0
    %v259 = vadd.f32 %v243, 1.0
    %v260 = vmul.f32 %v228, 0.043936934
    %v261 = vmul.f32 %v229, 0.043936934
    %v262 = vmul.f32 %v230, 0.043936934
    %v263 = vmul.f32 %v231, 0.043936934
    %v264 = vmul.f32 %v232, 0.043936934
    %v265 = vmul.f32 %v233, 0.043936934
    %v266 = vmul.f32 %v234, 0.043936934
    %v267 = vmul.f32 %v235, 0.043936934
    %v268 = vmul.f32 %v236, 0.043936934
    %v269 = vmul.f32 %v237, 0.043936934
    %v270 = vmul.f32 %v238, 0.043936934
    %v271 = vmul.f32 %v239, 0.043936934
    %v272 = vmul.f32 %v240, 0.043936934
    %v273 = vmul.f32 %v241, 0.043936934
    %v274 = vmul.f32 %v242, 0.043936934
    %v275 = vmul.f32 %v243, 0.043936934
    %v276 = vadd.f32 %v260, 1.0
    %v277 = vadd.f32 %v261, 1.0
    %v278 = vadd.f32 %v262, 1.0
    %v279 = vadd.f32 %v263, 1.0
    %v280 = vadd.f32 %v264, 1.0
    %v281 = vadd.f32 %v265, 1.0
    %v282 = vadd.f32 %v266, 1.0
    %v283 = vadd.f32 %v267, 1.0
    %v284 = vadd.f32 %v268, 1.0
    %v285 = vadd.f32 %v269, 1.0
    %v286 = vadd.f32 %v270, 1.0
    %v287 = vadd.f32 %v271, 1.0
    %v288 = vadd.f32 %v272, 1.0
    %v289 = vadd.f32 %v273, 1.0
    %v290 = vadd.f32 %v274, 1.0
    %v291 = vadd.f32 %v275, 1.0
    %v292 = vmul.f32 %v244, %v276
    %v293 = vmul.f32 %v245, %v277
    %v294 = vmul.f32 %v246, %v278
    %v295 = vmul.f32 %v247, %v279
    %v296 = vmul.f32 %v248, %v280
    %v297 = vmul.f32 %v249, %v281
    %v298 = vmul.f32 %v250, %v282
    %v299 = vmul.f32 %v251, %v283
    %v300 = vmul.f32 %v252, %v284
    %v301 = vmul.f32 %v253, %v285
    %v302 = vmul.f32 %v254, %v286
    %v303 = vmul.f32 %v255, %v287
    %v304 = vmul.f32 %v256, %v288
    %v305 = vmul.f32 %v257, %v289
    %v306 = vmul.f32 %v258, %v290
    %v307 = vmul.f32 %v259, %v291
    %v308 = vrcp.pop %v292
    %v309 = vrcp.pop %v293
    %v310 = vrcp.pop %v294
    %v311 = vrcp.pop %v295
    %v312 = vrcp.pop %v296
    %v313 = vrcp.pop %v297
    %v314 = vrcp.pop %v298
    %v315 = vrcp.pop %v299
    %v316 = vrcp.pop %v300
    %v317 = vrcp.pop %v301
    %v318 = vrcp.pop %v302
    %v319 = vrcp.pop %v303
    %v320 = vrcp.pop %v304
    %v321 = vrcp.pop %v305
    %v322 = vrcp.pop %v306
    %v323 = vrcp.pop %v307
    %v324 = vmul.f32 %v292, %v308
    %v325 = vmul.f32 %v293, %v309
    %v326 = vmul.f32 %v294, %v310
    %v327 = vmul.f32 %v295, %v311
    %v328 = vmul.f32 %v296, %v312
    %v329 = vmul.f32 %v297, %v313
    %v330 = vmul.f32 %v298, %v314
    %v331 = vmul.f32 %v299, %v315
    %v332 = vmul.f32 %v300, %v316
    %v333 = vmul.f32 %v301, %v317
    %v334 = vmul.f32 %v302, %v318
    %v335 = vmul.f32 %v303, %v319
    %v336 = vmul.f32 %v304, %v320
    %v337 = vmul.f32 %v305, %v321
    %v338 = vmul.f32 %v306, %v322
    %v339 = vmul.f32 %v307, %v323
    %v340 = vsub.f32 2.0, %v324
    %v341 = vsub.f32 2.0, %v325
    %v342 = vsub.f32 2.0, %v326
    %v343 = vsub.f32 2.0, %v327
    %v344 = vsub.f32 2.0, %v328
    %v345 = vsub.f32 2.0, %v329
    %v346 = vsub.f32 2.0, %v330
    %v347 = vsub.f32 2.0, %v331
    %v348 = vsub.f32 2.0, %v332
    %v349 = vsub.f32 2.0, %v333
    %v350 = vsub.f32 2.0, %v334
    %v351 = vsub.f32 2.0, %v335
    %v352 = vsub.f32 2.0, %v336
    %v353 = vsub.f32 2.0, %v337
    %v354 = vsub.f32 2.0, %v338
    %v355 = vsub.f32 2.0, %v339
    %v356 = vmul.f32 %v308, %v340
    %v357 = vmul.f32 %v309, %v341
    %v358 = vmul.f32 %v310, %v342
    %v359 = vmul.f32 %v311, %v343
    %v360 = vmul.f32 %v312, %v344
    %v361 = vmul.f32 %v313, %v345
    %v362 = vmul.f32 %v314, %v346
    %v363 = vmul.f32 %v315, %v347
    %v364 = vmul.f32 %v316, %v348
    %v365 = vmul.f32 %v317, %v349
    %v366 = vmul.f32 %v318, %v350
    %v367 = vmul.f32 %v319, %v351
    %v368 = vmul.f32 %v320, %v352
    %v369 = vmul.f32 %v321, %v353
    %v370 = vmul.f32 %v322, %v354
    %v371 = vmul.f32 %v323, %v355
    %v372 = vmul.f32 %v228, %v356
    %v373 = vmul.f32 %v229, %v357
    %v374 = vmul.f32 %v230, %v358
    %v375 = vmul.f32 %v231, %v359
    %v376 = vmul.f32 %v232, %v360
    %v377 = vmul.f32 %v233, %v361
    %v378 = vmul.f32 %v234, %v362
    %v379 = vmul.f32 %v235, %v363
    %v380 = vmul.f32 %v236, %v364
    %v381 = vmul.f32 %v237, %v365
    %v382 = vmul.f32 %v238, %v366
    %v383 = vmul.f32 %v239, %v367
    %v384 = vmul.f32 %v240, %v368
    %v385 = vmul.f32 %v241, %v369
    %v386 = vmul.f32 %v242, %v370
    %v387 = vmul.f32 %v243, %v371
    %v388 = vadd.f32 %v372, 0.0
    %v389 = vadd.f32 %v373, 0.0
    %v390 = vadd.f32 %v374, 0.0
    %v391 = vadd.f32 %v375, 0.0
    %v392 = vadd.f32 %v376, 0.0
    %v393 = vadd.f32 %v377, 0.0
    %v394 = vadd.f32 %v378, 0.0
    %v395 = vadd.f32 %v379, 0.0
    %v396 = vadd.f32 %v380, 0.0
    %v397 = vadd.f32 %v381, 0.0
    %v398 = vadd.f32 %v382, 0.0
    %v399 = vadd.f32 %v383, 0.0
    %v400 = vadd.f32 %v384, 0.0
    %v401 = vadd.f32 %v385, 0.0
    %v402 = vadd.f32 %v386, 0.0
    %v403 = vadd.f32 %v387, 0.0
    %s404 = scalar_lea.vmem [#allocation2], 2
    %v405 = vld [vmem:[%s404] sm:$0x3]
    %v406 = vsub.f32 0.5, %v405
    %v407 = vmul.f32 %v406, 50.0
    %s408 = ssub.s32 %s204, 128
    %v409 = vstv %s408
    %vm410 = vcmp.lt.s32.totalorder %v40, %v409
    %v411 = vmin.f32 %v407, 80.0
    %v412 = vmul.f32 %v411, 1.442695
    %v413 = vpow.pop %v412
    %v414 = vsel %vm410, %v413, 0.0
    %v415 = vmul.f32 %v414, %v170
    %v416 = vmul.f32 %v414, %v172
    %v417 = vmul.f32 %v414, %v174
    %v418 = vmul.f32 %v414, %v176
    %v419 = vmul.f32 %v414, %v178
    %v420 = vmul.f32 %v414, %v180
    %v421 = vmul.f32 %v414, %v182
    %v422 = vmul.f32 %v414, %v184
    %v423 = vmul.f32 %v414, %v186
    %v424 = vmul.f32 %v414, %v188
    %v425 = vmul.f32 %v414, %v190
    %v426 = vmul.f32 %v414, %v192
    %v427 = vmul.f32 %v414, %v194
    %v428 = vmul.f32 %v414, %v196
    %v429 = vmul.f32 %v414, %v198
    %v430 = vmul.f32 %v414, %v200
    %v431 = vmin.f32 %v415, 8.297617e+18
    %v432 = vmin.f32 %v416, 8.297617e+18
    %v433 = vmin.f32 %v417, 8.297617e+18
    %v434 = vmin.f32 %v418, 8.297617e+18
    %v435 = vmin.f32 %v419, 8.297617e+18
    %v436 = vmin.f32 %v420, 8.297617e+18
    %v437 = vmin.f32 %v421, 8.297617e+18
    %v438 = vmin.f32 %v422, 8.297617e+18
    %v439 = vmin.f32 %v423, 8.297617e+18
    %v440 = vmin.f32 %v424, 8.297617e+18
    %v441 = vmin.f32 %v425, 8.297617e+18
    %v442 = vmin.f32 %v426, 8.297617e+18
    %v443 = vmin.f32 %v427, 8.297617e+18
    %v444 = vmin.f32 %v428, 8.297617e+18
    %v445 = vmin.f32 %v429, 8.297617e+18
    %v446 = vmin.f32 %v430, 8.297617e+18
    %v447 = vadd.f32 %v431, 1.0
    %v448 = vadd.f32 %v432, 1.0
    %v449 = vadd.f32 %v433, 1.0
    %v450 = vadd.f32 %v434, 1.0
    %v451 = vadd.f32 %v435, 1.0
    %v452 = vadd.f32 %v436, 1.0
    %v453 = vadd.f32 %v437, 1.0
    %v454 = vadd.f32 %v438, 1.0
    %v455 = vadd.f32 %v439, 1.0
    %v456 = vadd.f32 %v440, 1.0
    %v457 = vadd.f32 %v441, 1.0
    %v458 = vadd.f32 %v442, 1.0
    %v459 = vadd.f32 %v443, 1.0
    %v460 = vadd.f32 %v444, 1.0
    %v461 = vadd.f32 %v445, 1.0
    %v462 = vadd.f32 %v446, 1.0
    %v463 = vmul.f32 %v431, 0.043936934
    %v464 = vmul.f32 %v432, 0.043936934
    %v465 = vmul.f32 %v433, 0.043936934
    %v466 = vmul.f32 %v434, 0.043936934
    %v467 = vmul.f32 %v435, 0.043936934
    %v468 = vmul.f32 %v436, 0.043936934
    %v469 = vmul.f32 %v437, 0.043936934
    %v470 = vmul.f32 %v438, 0.043936934
    %v471 = vmul.f32 %v439, 0.043936934
    %v472 = vmul.f32 %v440, 0.043936934
    %v473 = vmul.f32 %v441, 0.043936934
    %v474 = vmul.f32 %v442, 0.043936934
    %v475 = vmul.f32 %v443, 0.043936934
    %v476 = vmul.f32 %v444, 0.043936934
    %v477 = vmul.f32 %v445, 0.043936934
    %v478 = vmul.f32 %v446, 0.043936934
    %v479 = vadd.f32 %v463, 1.0
    %v480 = vadd.f32 %v464, 1.0
    %v481 = vadd.f32 %v465, 1.0
    %v482 = vadd.f32 %v466, 1.0
    %v483 = vadd.f32 %v467, 1.0
    %v484 = vadd.f32 %v468, 1.0
    %v485 = vadd.f32 %v469, 1.0
    %v486 = vadd.f32 %v470, 1.0
    %v487 = vadd.f32 %v471, 1.0
    %v488 = vadd.f32 %v472, 1.0
    %v489 = vadd.f32 %v473, 1.0
    %v490 = vadd.f32 %v474, 1.0
    %v491 = vadd.f32 %v475, 1.0
    %v492 = vadd.f32 %v476, 1.0
    %v493 = vadd.f32 %v477, 1.0
    %v494 = vadd.f32 %v478, 1.0
    %v495 = vmul.f32 %v447, %v479
    %v496 = vmul.f32 %v448, %v480
    %v497 = vmul.f32 %v449, %v481
    %v498 = vmul.f32 %v450, %v482
    %v499 = vmul.f32 %v451, %v483
    %v500 = vmul.f32 %v452, %v484
    %v501 = vmul.f32 %v453, %v485
    %v502 = vmul.f32 %v454, %v486
    %v503 = vmul.f32 %v455, %v487
    %v504 = vmul.f32 %v456, %v488
    %v505 = vmul.f32 %v457, %v489
    %v506 = vmul.f32 %v458, %v490
    %v507 = vmul.f32 %v459, %v491
    %v508 = vmul.f32 %v460, %v492
    %v509 = vmul.f32 %v461, %v493
    %v510 = vmul.f32 %v462, %v494
    %v511 = vrcp.pop %v495
    %v512 = vrcp.pop %v496
    %v513 = vrcp.pop %v497
    %v514 = vrcp.pop %v498
    %v515 = vrcp.pop %v499
    %v516 = vrcp.pop %v500
    %v517 = vrcp.pop %v501
    %v518 = vrcp.pop %v502
    %v519 = vrcp.pop %v503
    %v520 = vrcp.pop %v504
    %v521 = vrcp.pop %v505
    %v522 = vrcp.pop %v506
    %v523 = vrcp.pop %v507
    %v524 = vrcp.pop %v508
    %v525 = vrcp.pop %v509
    %v526 = vrcp.pop %v510
    %v527 = vmul.f32 %v495, %v511
    %v528 = vmul.f32 %v496, %v512
    %v529 = vmul.f32 %v497, %v513
    %v530 = vmul.f32 %v498, %v514
    %v531 = vmul.f32 %v499, %v515
    %v532 = vmul.f32 %v500, %v516
    %v533 = vmul.f32 %v501, %v517
    %v534 = vmul.f32 %v502, %v518
    %v535 = vmul.f32 %v503, %v519
    %v536 = vmul.f32 %v504, %v520
    %v537 = vmul.f32 %v505, %v521
    %v538 = vmul.f32 %v506, %v522
    %v539 = vmul.f32 %v507, %v523
    %v540 = vmul.f32 %v508, %v524
    %v541 = vmul.f32 %v509, %v525
    %v542 = vmul.f32 %v510, %v526
    %v543 = vsub.f32 2.0, %v527
    %v544 = vsub.f32 2.0, %v528
    %v545 = vsub.f32 2.0, %v529
    %v546 = vsub.f32 2.0, %v530
    %v547 = vsub.f32 2.0, %v531
    %v548 = vsub.f32 2.0, %v532
    %v549 = vsub.f32 2.0, %v533
    %v550 = vsub.f32 2.0, %v534
    %v551 = vsub.f32 2.0, %v535
    %v552 = vsub.f32 2.0, %v536
    %v553 = vsub.f32 2.0, %v537
    %v554 = vsub.f32 2.0, %v538
    %v555 = vsub.f32 2.0, %v539
    %v556 = vsub.f32 2.0, %v540
    %v557 = vsub.f32 2.0, %v541
    %v558 = vsub.f32 2.0, %v542
    %v559 = vmul.f32 %v511, %v543
    %v560 = vmul.f32 %v512, %v544
    %v561 = vmul.f32 %v513, %v545
    %v562 = vmul.f32 %v514, %v546
    %v563 = vmul.f32 %v515, %v547
    %v564 = vmul.f32 %v516, %v548
    %v565 = vmul.f32 %v517, %v549
    %v566 = vmul.f32 %v518, %v550
    %v567 = vmul.f32 %v519, %v551
    %v568 = vmul.f32 %v520, %v552
    %v569 = vmul.f32 %v521, %v553
    %v570 = vmul.f32 %v522, %v554
    %v571 = vmul.f32 %v523, %v555
    %v572 = vmul.f32 %v524, %v556
    %v573 = vmul.f32 %v525, %v557
    %v574 = vmul.f32 %v526, %v558
    %v575 = vmul.f32 %v431, %v559
    %v576 = vmul.f32 %v432, %v560
    %v577 = vmul.f32 %v433, %v561
    %v578 = vmul.f32 %v434, %v562
    %v579 = vmul.f32 %v435, %v563
    %v580 = vmul.f32 %v436, %v564
    %v581 = vmul.f32 %v437, %v565
    %v582 = vmul.f32 %v438, %v566
    %v583 = vmul.f32 %v439, %v567
    %v584 = vmul.f32 %v440, %v568
    %v585 = vmul.f32 %v441, %v569
    %v586 = vmul.f32 %v442, %v570
    %v587 = vmul.f32 %v443, %v571
    %v588 = vmul.f32 %v444, %v572
    %v589 = vmul.f32 %v445, %v573
    %v590 = vmul.f32 %v446, %v574
    %v591 = vadd.f32 %v388, %v575
    %v592 = vadd.f32 %v389, %v576
    %v593 = vadd.f32 %v390, %v577
    %v594 = vadd.f32 %v391, %v578
    %v595 = vadd.f32 %v392, %v579
    %v596 = vadd.f32 %v393, %v580
    %v597 = vadd.f32 %v394, %v581
    %v598 = vadd.f32 %v395, %v582
    %v599 = vadd.f32 %v396, %v583
    %v600 = vadd.f32 %v397, %v584
    %v601 = vadd.f32 %v398, %v585
    %v602 = vadd.f32 %v399, %v586
    %v603 = vadd.f32 %v400, %v587
    %v604 = vadd.f32 %v401, %v588
    %v605 = vadd.f32 %v402, %v589
    %v606 = vadd.f32 %v403, %v590
    %vm607 = vcmask 1041408
    %v608 = vsel %vm607, %v591, 0.0
    %609 = vadd.xlane.f32.xlu0 %v608
    %v610 = vpop.xlane.xlu0 %609
    %v611 = vsel %vm607, %v592, 0.0
    %612 = vadd.xlane.f32.xlu0 %v611
    %v613 = vpop.xlane.xlu0 %612
    %v614 = vsel %vm607, %v593, 0.0
    %615 = vadd.xlane.f32.xlu0 %v614
    %v616 = vpop.xlane.xlu0 %615
    %v617 = vsel %vm607, %v594, 0.0
    %618 = vadd.xlane.f32.xlu0 %v617
    %v619 = vpop.xlane.xlu0 %618
    %v620 = vsel %vm607, %v595, 0.0
    %621 = vadd.xlane.f32.xlu0 %v620
    %v622 = vpop.xlane.xlu0 %621
    %v623 = vsel %vm607, %v596, 0.0
    %624 = vadd.xlane.f32.xlu0 %v623
    %v625 = vpop.xlane.xlu0 %624
    %v626 = vsel %vm607, %v597, 0.0
    %627 = vadd.xlane.f32.xlu0 %v626
    %v628 = vpop.xlane.xlu0 %627
    %v629 = vsel %vm607, %v598, 0.0
    %630 = vadd.xlane.f32.xlu0 %v629
    %v631 = vpop.xlane.xlu0 %630
    %v632 = vsel %vm607, %v599, 0.0
    %633 = vadd.xlane.f32.xlu0 %v632
    %v634 = vpop.xlane.xlu0 %633
    %v635 = vsel %vm607, %v600, 0.0
    %636 = vadd.xlane.f32.xlu0 %v635
    %v637 = vpop.xlane.xlu0 %636
    %v638 = vsel %vm607, %v601, 0.0
    %639 = vadd.xlane.f32.xlu0 %v638
    %v640 = vpop.xlane.xlu0 %639
    %v641 = vsel %vm607, %v602, 0.0
    %642 = vadd.xlane.f32.xlu0 %v641
    %v643 = vpop.xlane.xlu0 %642
    %v644 = vsel %vm607, %v603, 0.0
    %645 = vadd.xlane.f32.xlu0 %v644
    %v646 = vpop.xlane.xlu0 %645
    %v647 = vsel %vm607, %v604, 0.0
    %648 = vadd.xlane.f32.xlu0 %v647
    %v649 = vpop.xlane.xlu0 %648
    %v650 = vsel %vm607, %v605, 0.0
    %651 = vadd.xlane.f32.xlu0 %v650
    %v652 = vpop.xlane.xlu0 %651
    %v653 = vsel %vm607, %v606, 0.0
    %654 = vadd.xlane.f32.xlu0 %v653
    %v655 = vpop.xlane.xlu0 %654
    %v656 = vmul.f32 %v610, 0.9560631
    %v657 = vmul.f32 %v613, 0.9560631
    %v658 = vmul.f32 %v616, 0.9560631
    %v659 = vmul.f32 %v619, 0.9560631
    %v660 = vmul.f32 %v622, 0.9560631
    %v661 = vmul.f32 %v625, 0.9560631
    %v662 = vmul.f32 %v628, 0.9560631
    %v663 = vmul.f32 %v631, 0.9560631
    %v664 = vmul.f32 %v634, 0.9560631
    %v665 = vmul.f32 %v637, 0.9560631
    %v666 = vmul.f32 %v640, 0.9560631
    %v667 = vmul.f32 %v643, 0.9560631
    %v668 = vmul.f32 %v646, 0.9560631
    %v669 = vmul.f32 %v649, 0.9560631
    %v670 = vmul.f32 %v652, 0.9560631
    %v671 = vmul.f32 %v655, 0.9560631
    %v672 = vld [vmem:[%s1] sm:$0xff]
    %v673 = vld [vmem:[%s1 + $0x8] sm:$0xff]
    %v690 = vlaneseq
    %v691 = vshrl.u32 %v690, 7
    %v692 = vsub.s32 %v40, %v691
    %v693 = vrot.slane %v656, %v692
    %v694 = vlaneseq
    %v695 = vshrl.u32 %v694, 7
    %v696 = vsub.s32 %v40, %v695
    %v697 = vrot.slane %v657, %v696
    %v698 = vlaneseq
    %v699 = vshrl.u32 %v698, 7
    %v700 = vsub.s32 %v40, %v699
    %v701 = vrot.slane %v658, %v700
    %v702 = vlaneseq
    %v703 = vshrl.u32 %v702, 7
    %v704 = vsub.s32 %v40, %v703
    %v705 = vrot.slane %v659, %v704
    %v706 = vlaneseq
    %v707 = vshrl.u32 %v706, 7
    %v708 = vsub.s32 %v40, %v707
    %v709 = vrot.slane %v660, %v708
    %v710 = vlaneseq
    %v711 = vshrl.u32 %v710, 7
    %v712 = vsub.s32 %v40, %v711
    %v713 = vrot.slane %v661, %v712
    %v714 = vlaneseq
    %v715 = vshrl.u32 %v714, 7
    %v716 = vsub.s32 %v40, %v715
    %v717 = vrot.slane %v662, %v716
    %v718 = vlaneseq
    %v719 = vshrl.u32 %v718, 7
    %v720 = vsub.s32 %v40, %v719
    %v721 = vrot.slane %v663, %v720
    %v722 = vlaneseq
    %v723 = vshrl.u32 %v722, 7
    %v724 = vsub.s32 %v40, %v723
    %v725 = vrot.slane %v664, %v724
    %v726 = vlaneseq
    %v727 = vshrl.u32 %v726, 7
    %v728 = vsub.s32 %v40, %v727
    %v729 = vrot.slane %v665, %v728
    %v730 = vlaneseq
    %v731 = vshrl.u32 %v730, 7
    %v732 = vsub.s32 %v40, %v731
    %v733 = vrot.slane %v666, %v732
    %v734 = vlaneseq
    %v735 = vshrl.u32 %v734, 7
    %v736 = vsub.s32 %v40, %v735
    %v737 = vrot.slane %v667, %v736
    %v738 = vlaneseq
    %v739 = vshrl.u32 %v738, 7
    %v740 = vsub.s32 %v40, %v739
    %v741 = vrot.slane %v668, %v740
    %v742 = vlaneseq
    %v743 = vshrl.u32 %v742, 7
    %v744 = vsub.s32 %v40, %v743
    %v745 = vrot.slane %v669, %v744
    %v746 = vlaneseq
    %v747 = vshrl.u32 %v746, 7
    %v748 = vsub.s32 %v40, %v747
    %v749 = vrot.slane %v670, %v748
    %v750 = vlaneseq
    %v751 = vshrl.u32 %v750, 7
    %v752 = vsub.s32 %v40, %v751
    %v753 = vrot.slane %v671, %v752
    %vm754 = vcmask 1041409
    %v755 = vsel %vm754, %v697, %v693
    %vm756 = vcmask 1042434
    %v757 = vsel %vm756, %v701, %v755
    %vm758 = vcmask 1043459
    %v759 = vsel %vm758, %v705, %v757
    %vm760 = vcmask 1044484
    %v761 = vsel %vm760, %v709, %v759
    %vm762 = vcmask 1045509
    %v763 = vsel %vm762, %v713, %v761
    %vm764 = vcmask 1046534
    %v765 = vsel %vm764, %v717, %v763
    %vm766 = vcmask 1047559
    %v767 = vsel %vm766, %v721, %v765
    %v768 = vsel %vm754, %v729, %v725
    %v769 = vsel %vm756, %v733, %v768
    %v770 = vsel %vm758, %v737, %v769
    %v771 = vsel %vm760, %v741, %v770
    %v772 = vsel %vm762, %v745, %v771
    %v773 = vsel %vm764, %v749, %v772
    %v774 = vsel %vm766, %v753, %v773
    %v777 = vadd.f32 %v672, %v767
    %v778 = vadd.f32 %v673, %v774
    %vm779 = vcmask 15360
    %780 = vst.msk [vmem:[%s1] sm:$0xff] %vm779, %v777
    %781 = vst.msk [vmem:[%s1 + $0x8] sm:$0xff] %vm779, %v778
    // Predicated region
    $region14: #{tpu_custom_call.1} parent=1 // pred_check
      _
    $region15: #{tpu_custom_call.1} parent=1 // pred_check_branch
      %783 = sbr.rel (0) target = $region17
    $region16: #{tpu_custom_call.1} parent=1 // pred_region
      _
    $region17: #{tpu_custom_call.1} parent=1 // pred_fallthru
      _
    // Predicated region
    $region18: #{tpu_custom_call.1} parent=1 // pred_check
      _
    $region19: #{tpu_custom_call.1} parent=1 // pred_check_branch
      %785 = sbr.rel (0) target = $region21
    $region20: #{tpu_custom_call.1} parent=1 // pred_region
      _
    $region21: #{tpu_custom_call.1} parent=1 // pred_fallthru
      _
    %786 = vsyncpa [#allocation3], 1

</llo_original>
